<compile_context>
chip_gen: v7x
topology: tpu7x:2x2x1
jax: 0.10.0
libtpu: 0.0.40
codegen_flags: <defaults>
</compile_context>

<pallas_src>
import functools

import jax
import jax.numpy as jnp
import numpy as np
from jax.experimental import pallas as pl
from jax.experimental.pallas import tpu as pltpu

IN_SIZE = 256
HID1 = 64
HID2 = 16


def _round_up(n, m):
    return ((n + m - 1) // m) * m


@functools.lru_cache(maxsize=1)
def _tb_max():
    """Per-generation max batch-tile rows.

    v5e/v6e: tb=4096 -> 4 MiB f32 x tile (x2 double-buffered) + out + weights
             ~= 8.8 MiB VMEM, under v5e's 16 MiB default scoped limit (no
             vmem_limit_bytes override needed).
    v7x:     tb=8192 -> ~17.3 MiB, under the 32 MiB default scoped limit; the
             bigger tile amortizes the ~0.35us/step overhead against 3.2 TB/s HBM
             (a 1 MiB step there would be ~50% fixed overhead).
    """
    try:
        kind = jax.devices()[0].device_kind.lower()
    except Exception:  # defensive: default is safe on every generation
        return 4096
    return 8192 if "7" in kind else 4096


def mlp_kernel(x_ref, w1_ref, b1_ref, w2_ref, b2_ref, o_ref):
    # x_ref:  (tb, 256)   w1_ref: (256, 64)   b1_ref: (1, 64)
    # w2_ref: (64, 16)    b2_ref: (1, 16)     o_ref:  (tb, 16)
    x = x_ref[...]
    w1 = w1_ref[...]
    if x.dtype != w1.dtype:          # optional bf16-weight path: cast streamed tile
        x = x.astype(w1.dtype)
    h = jnp.dot(x, w1, preferred_element_type=jnp.float32) + b1_ref[...]
    h = jnp.maximum(h, 0.0)                                   # relu1
    w2 = w2_ref[...]
    if h.dtype != w2.dtype:
        h = h.astype(w2.dtype)
    y = jnp.dot(h, w2, preferred_element_type=jnp.float32) + b2_ref[...]
    o_ref[...] = jnp.maximum(y, 0.0).astype(o_ref.dtype)      # relu2


def prepare_params(w1, b1, w2, b2, compute_dtype=jnp.float32):
    """One-time layout prep: PyTorch Linear W (out,in) -> (in,out); biases -> (1,out).

    compute_dtype=jnp.bfloat16 opts into bf16 weights + in-kernel bf16 MXU dots
    (numerics-gated perf option; biases and accumulation stay f32).
    """
    return (
        jnp.asarray(w1, jnp.float32).T.astype(compute_dtype),   # (256, 64)
        jnp.asarray(b1, jnp.float32).reshape(1, HID1),
        jnp.asarray(w2, jnp.float32).T.astype(compute_dtype),   # (64, 16)
        jnp.asarray(b2, jnp.float32).reshape(1, HID2),
    )


@jax.jit
def classifier_forward(v, w1_t, b1_2d, w2_t, b2_2d):
    """v: any shape with total elements divisible by 256 (mirrors v.view(-1, 256))."""
    x = v.reshape(-1, IN_SIZE)
    if x.dtype != jnp.float32:
        x = x.astype(jnp.float32)
    B = x.shape[0]

    # Batch tile: big enough to amortize the per-grid-step overhead and fill the
    # MXU; for B >= 1024 force at least two grid steps so both v7x TensorCores
    # get work under dimension_semantics=("parallel",).
    if B >= 1024:
        tb = _round_up(pl.cdiv(B, 2), 8)
    else:
        tb = _round_up(B, 8)
    tb = min(_tb_max(), tb)

    # No jnp.pad: the final block may be partial (masked output writes).
    grid = (pl.cdiv(B, tb),)

    weight_bytes = ((IN_SIZE * HID1 + HID1 * HID2) * w1_t.dtype.itemsize
                    + (HID1 + HID2) * 4)
    cost = pl.CostEstimate(
        flops=2 * B * (IN_SIZE * HID1 + HID1 * HID2),
        transcendentals=0,
        bytes_accessed=B * IN_SIZE * 4 + B * HID2 * 4 + weight_bytes,
    )

    return pl.pallas_call(
        mlp_kernel,
        out_shape=jax.ShapeDtypeStruct((B, HID2), jnp.float32),
        grid_spec=pltpu.PrefetchScalarGridSpec(
            num_scalar_prefetch=0,
            grid=grid,
            in_specs=[
                pl.BlockSpec((tb, IN_SIZE), lambda i: (i, 0)),    # x (streamed)
                # Constant index maps: Pallas fetches these once and skips the
                # re-DMA on later steps, so weights/biases stay resident in VMEM.
                pl.BlockSpec((IN_SIZE, HID1), lambda i: (0, 0)),  # W1
                pl.BlockSpec((1, HID1), lambda i: (0, 0)),        # b1
                pl.BlockSpec((HID1, HID2), lambda i: (0, 0)),     # W2
                pl.BlockSpec((1, HID2), lambda i: (0, 0)),        # b2
            ],
            out_specs=pl.BlockSpec((tb, HID2), lambda i: (i, 0)),
        ),
        compiler_params=pltpu.CompilerParams(
            dimension_semantics=("parallel",),
        ),
        cost_estimate=cost,
    )(x, w1_t, b1_2d, w2_t, b2_2d)


def init_params(key):
    """Deterministic synthetic params, PyTorch Linear shapes: W (out,in), b (out,)."""
    k1, k2, k3, k4 = jax.random.split(key, 4)
    w1 = jax.random.normal(k1, (HID1, IN_SIZE), jnp.float32) * 0.05
    b1 = jax.random.normal(k2, (HID1,), jnp.float32) * 0.05
    w2 = jax.random.normal(k3, (HID2, HID1), jnp.float32) * 0.05
    b2 = jax.random.normal(k4, (HID2,), jnp.float32) * 0.05
    return w1, b1, w2, b2


def _ref_forward(v, w1, b1, w2, b2):
    """float64 numpy reference (precision-independent ground truth)."""
    x = np.asarray(v, np.float64).reshape(-1, IN_SIZE)
    h = np.maximum(x @ np.asarray(w1, np.float64).T + np.asarray(b1, np.float64), 0.0)
    return np.maximum(h @ np.asarray(w2, np.float64).T + np.asarray(b2, np.float64), 0.0)


if __name__ == "__main__":
    key = jax.random.PRNGKey(0)
    kx, kx2, kx3, kp = jax.random.split(key, 4)

    w1, b1, w2, b2 = init_params(kp)
    params_f32 = prepare_params(w1, b1, w2, b2)  # one-time layout prep

    # Tolerances: the TPU MXU may execute f32 matmuls as bf16 passes under default
    # precision, so allow ~1e-2 absolute error vs. the float64 reference
    # (outputs here are O(0.1-1); expected worst-case deviation is ~5e-3).
    TOL_F32 = dict(atol=2e-2, rtol=2e-2)
    TOL_BF16 = dict(atol=6e-2, rtol=6e-2)

    # Small input consistent with forward: view(-1, 256) => batch 8, feature 256.
    x = jax.random.normal(kx, (8, 16, 16), jnp.float32)
    out = jax.block_until_ready(classifier_forward(x, *params_f32))
    ref = _ref_forward(x, w1, b1, w2, b2)
    assert out.shape == (8, HID2)
    assert np.allclose(np.asarray(out), ref, **TOL_F32), "mismatch vs reference (B=8)"

    # Remainder path: single partial block (B=20, tb=24), validates masked writes.
    x2 = jax.random.normal(kx2, (20, IN_SIZE), jnp.float32)
    out2 = jax.block_until_ready(classifier_forward(x2, *params_f32))
    ref2 = _ref_forward(x2, w1, b1, w2, b2)
    assert out2.shape == (20, HID2)
    assert np.allclose(np.asarray(out2), ref2, **TOL_F32), "mismatch vs reference (B=20)"

    # Multi-step grid with a partial last block (B=1050 -> tb=528, grid=(2,)).
    x3 = jax.random.normal(kx3, (1050, IN_SIZE), jnp.float32)
    out3 = jax.block_until_ready(classifier_forward(x3, *params_f32))
    ref3 = _ref_forward(x3, w1, b1, w2, b2)
    assert out3.shape == (1050, HID2)
    assert np.allclose(np.asarray(out3), ref3, **TOL_F32), "mismatch vs reference (B=1050)"

    # Optional bf16-weight perf path (numerics-gated; looser tolerance vs f64 ref).
    params_bf16 = prepare_params(w1, b1, w2, b2, compute_dtype=jnp.bfloat16)
    out_bf16 = jax.block_until_ready(classifier_forward(x, *params_bf16))
    assert out_bf16.shape == (8, HID2)
    assert np.allclose(np.asarray(out_bf16), ref, **TOL_BF16), "mismatch vs reference (bf16)"

    print("KERNEL_OK")
</pallas_src>

<mosaic_0001>
module attributes {stable_mosaic.version = 11 : i64} {
  func.func @mlp_kernel(%arg0: i32, %arg1: memref<8x256xf32, #tpu.memory_space<vmem>>, %arg2: memref<256x64xf32, #tpu.memory_space<vmem>>, %arg3: memref<1x64xf32, #tpu.memory_space<vmem>>, %arg4: memref<64x16xf32, #tpu.memory_space<vmem>>, %arg5: memref<1x16xf32, #tpu.memory_space<vmem>>, %arg6: memref<8x16xf32, #tpu.memory_space<vmem>>) attributes {dimension_semantics = [#tpu.dimension_semantics<parallel>], iteration_bounds = array<i64: 1>, scalar_prefetch = 0 : i64, scratch_operands = 0 : i64, tpu.core_type = #tpu.core_type<tc>, window_params = [{transform_indices = @transform_0, window_bounds = array<i64: 8, 256>}, {pipeline_mode = #tpu.pipeline_mode<synchronous>, transform_indices = @transform_1, window_bounds = array<i64: 256, 64>}, {pipeline_mode = #tpu.pipeline_mode<synchronous>, transform_indices = @transform_2, window_bounds = array<i64: 1, 64>}, {pipeline_mode = #tpu.pipeline_mode<synchronous>, transform_indices = @transform_3, window_bounds = array<i64: 64, 16>}, {pipeline_mode = #tpu.pipeline_mode<synchronous>, transform_indices = @transform_4, window_bounds = array<i64: 1, 16>}, {transform_indices = @transform_5, window_bounds = array<i64: 8, 16>}]} {
    %c0 = arith.constant 0 : index
    %c0_0 = arith.constant 0 : index
    %0 = vector.load %arg1[%c0, %c0_0] : memref<8x256xf32, #tpu.memory_space<vmem>>, vector<8x256xf32>
    %c0_1 = arith.constant 0 : index
    %c0_2 = arith.constant 0 : index
    %1 = vector.load %arg2[%c0_1, %c0_2] : memref<256x64xf32, #tpu.memory_space<vmem>>, vector<256x64xf32>
    %cst = arith.constant dense<0.000000e+00> : vector<8x64xf32>
    %2 = tpu.matmul %0, %1, %cst {dimension_numbers = #tpu.dot_dimension_numbers<[1], [0], [0], [1], [0, 0, 1, 1], [], []>} : vector<8x256xf32>, vector<256x64xf32>, vector<8x64xf32> -> vector<8x64xf32>
    %c0_3 = arith.constant 0 : index
    %c0_4 = arith.constant 0 : index
    %3 = vector.load %arg3[%c0_3, %c0_4] : memref<1x64xf32, #tpu.memory_space<vmem>>, vector<1x64xf32>
    %4 = vector.broadcast %3 : vector<1x64xf32> to vector<8x64xf32>
    %5 = arith.addf %2, %4 : vector<8x64xf32>
    %cst_5 = arith.constant 0.000000e+00 : f32
    %6 = vector.broadcast %cst_5 : f32 to vector<8x64xf32>
    %7 = arith.maximumf %5, %6 : vector<8x64xf32>
    %c0_6 = arith.constant 0 : index
    %c0_7 = arith.constant 0 : index
    %8 = vector.load %arg4[%c0_6, %c0_7] : memref<64x16xf32, #tpu.memory_space<vmem>>, vector<64x16xf32>
    %cst_8 = arith.constant dense<0.000000e+00> : vector<8x16xf32>
    %9 = tpu.matmul %7, %8, %cst_8 {dimension_numbers = #tpu.dot_dimension_numbers<[1], [0], [0], [1], [0, 0, 1, 1], [], []>} : vector<8x64xf32>, vector<64x16xf32>, vector<8x16xf32> -> vector<8x16xf32>
    %c0_9 = arith.constant 0 : index
    %c0_10 = arith.constant 0 : index
    %10 = vector.load %arg5[%c0_9, %c0_10] : memref<1x16xf32, #tpu.memory_space<vmem>>, vector<1x16xf32>
    %11 = vector.broadcast %10 : vector<1x16xf32> to vector<8x16xf32>
    %12 = arith.addf %9, %11 : vector<8x16xf32>
    %cst_11 = arith.constant 0.000000e+00 : f32
    %13 = vector.broadcast %cst_11 : f32 to vector<8x16xf32>
    %14 = arith.maximumf %12, %13 : vector<8x16xf32>
    %c0_12 = arith.constant 0 : index
    %c0_13 = arith.constant 0 : index
    %15 = vector.load %arg6[%c0_12, %c0_13] : memref<8x16xf32, #tpu.memory_space<vmem>>, vector<8x16xf32>
    tpu.vector_store %arg6[%c0_12, %c0_13], %14 {strides = array<i32>} : memref<8x16xf32, #tpu.memory_space<vmem>>, vector<8x16xf32>,
    return
  }
  func.func @transform_0(%arg0: i32) -> (i32, i32) {
    %c0_i32 = arith.constant 0 : i32
    %c0_i32_0 = arith.constant 0 : i32
    return %arg0, %c0_i32 : i32, i32
  }
  func.func @transform_1(%arg0: i32) -> (i32, i32) {
    %c0_i32 = arith.constant 0 : i32
    %c0_i32_0 = arith.constant 0 : i32
    %c0_i32_1 = arith.constant 0 : i32
    return %c0_i32, %c0_i32_0 : i32, i32
  }
  func.func @transform_2(%arg0: i32) -> (i32, i32) {
    %c0_i32 = arith.constant 0 : i32
    %c0_i32_0 = arith.constant 0 : i32
    %c0_i32_1 = arith.constant 0 : i32
    return %c0_i32, %c0_i32_0 : i32, i32
  }
  func.func @transform_3(%arg0: i32) -> (i32, i32) {
    %c0_i32 = arith.constant 0 : i32
    %c0_i32_0 = arith.constant 0 : i32
    %c0_i32_1 = arith.constant 0 : i32
    return %c0_i32, %c0_i32_0 : i32, i32
  }
  func.func @transform_4(%arg0: i32) -> (i32, i32) {
    %c0_i32 = arith.constant 0 : i32
    %c0_i32_0 = arith.constant 0 : i32
    %c0_i32_1 = arith.constant 0 : i32
    return %c0_i32, %c0_i32_0 : i32, i32
  }
  func.func @transform_5(%arg0: i32) -> (i32, i32) {
    %c0_i32 = arith.constant 0 : i32
    %c0_i32_0 = arith.constant 0 : i32
    return %arg0, %c0_i32 : i32, i32
  }
}

</mosaic_0001>

<llo_original>
// kernel: classifier_forward.1
$region0: #{classifier_forward.1}
  #allocation0 [shape = 'u32[]', space=smem, size = 0x4, offset = 0x4, fixed_abs, tag = 'smem constant byte address 0x4 - core index']
  #allocation1 [shape = 'u32[144,128]{1,0:T(1,128)}', space=vmem, size = 0x12000, scoped, tag = 'internal scratch']
  %s0 = inlined_call_operand.vmem [shape: f32[8,256], index: 0, kind: input, shape index: {}]
  %s1 = inlined_call_operand.vmem [shape: f32[256,64], index: 1, kind: input, shape index: {}]
  %s2 = inlined_call_operand.vmem [shape: f32[1,64], index: 2, kind: input, shape index: {}]
  %s3 = inlined_call_operand.vmem [shape: f32[64,16], index: 3, kind: input, shape index: {}]
  %s4 = inlined_call_operand.vmem [shape: f32[1,16], index: 4, kind: input, shape index: {}]
  %s5 = inlined_call_operand.hbm [shape: f32[8,16], index: 5, kind: output, shape index: {}]
  %s6 = sld [smem:[#allocation0]]
  $region30: #{classifier_forward.1} parent=0
    _
  %s8 = ssub.s32 1, %s6
  %s9 = scalar_select 0, %s8, %s6
  $region1: #{classifier_forward.1} parent=0
    #allocation2 [shape = 'u8[4096]{0}', space=vmem, size = 0x1000, scoped, tag = 'output window, operand 0, single buffered']
    #allocation3 [shape = 's32[1]{0}', space=sflag, size = 0x4, scoped, tag = 'scoped memory for classifier_forward.1']
    %10 = vsyncpa [#allocation3], 0
    // Predicated region
    $region2: #{classifier_forward.1} parent=1 // pred_check
      _
    $region3: #{classifier_forward.1} parent=1 // pred_check_branch
      %12 = sbr.rel (0) target = $region5
    $region4: #{classifier_forward.1} parent=1 // pred_region
      _
    $region5: #{classifier_forward.1} parent=1 // pred_fallthru
      _
    // Predicated region
    $region6: #{classifier_forward.1} parent=1 // pred_check
      _
    $region7: #{classifier_forward.1} parent=1 // pred_check_branch
      %14 = sbr.rel (0) target = $region9
    $region8: #{classifier_forward.1} parent=1 // pred_region
      _
    $region9: #{classifier_forward.1} parent=1 // pred_fallthru
      _
    // Predicated region
    $region10: #{classifier_forward.1} parent=1 // pred_check
      _
    $region11: #{classifier_forward.1} parent=1 // pred_check_branch
      %16 = sbr.rel (0) target = $region13
    $region12: #{classifier_forward.1} parent=1 // pred_region
      _
    $region13: #{classifier_forward.1} parent=1 // pred_fallthru
      _
    // Predicated region
    $region14: #{classifier_forward.1} parent=1 // pred_check
      _
    $region15: #{classifier_forward.1} parent=1 // pred_check_branch
      %18 = sbr.rel (0) target = $region17
    $region16: #{classifier_forward.1} parent=1 // pred_region
      _
    $region17: #{classifier_forward.1} parent=1 // pred_fallthru
      _
    // Predicated region
    $region18: #{classifier_forward.1} parent=1 // pred_check
      _
    $region19: #{classifier_forward.1} parent=1 // pred_check_branch
      %20 = sbr.rel (0) target = $region21
    $region20: #{classifier_forward.1} parent=1 // pred_region
      _
    $region21: #{classifier_forward.1} parent=1 // pred_fallthru
      _
    %v21 = vld [vmem:[%s0] sm:$0xff]
    %v22 = vld [vmem:[%s0 + $0x8] sm:$0xff]
    %v23 = vld [vmem:[%s1] sm:$0xff]
    %v24 = vld [vmem:[%s1 + $0x8] sm:$0xff]
    %v25 = vld [vmem:[%s1 + $0x10] sm:$0xff]
    %v26 = vld [vmem:[%s1 + $0x18] sm:$0xff]
    %v27 = vld [vmem:[%s1 + $0x20] sm:$0xff]
    %v28 = vld [vmem:[%s1 + $0x28] sm:$0xff]
    %v29 = vld [vmem:[%s1 + $0x30] sm:$0xff]
    %v30 = vld [vmem:[%s1 + $0x38] sm:$0xff]
    %v31 = vld [vmem:[%s1 + $0x40] sm:$0xff]
    %v32 = vld [vmem:[%s1 + $0x48] sm:$0xff]
    %v33 = vld [vmem:[%s1 + $0x50] sm:$0xff]
    %v34 = vld [vmem:[%s1 + $0x58] sm:$0xff]
    %v35 = vld [vmem:[%s1 + $0x60] sm:$0xff]
    %v36 = vld [vmem:[%s1 + $0x68] sm:$0xff]
    %v37 = vld [vmem:[%s1 + $0x70] sm:$0xff]
    %v38 = vld [vmem:[%s1 + $0x78] sm:$0xff]
    %v39 = vld [vmem:[%s1 + $0x80] sm:$0xff]
    %v40 = vld [vmem:[%s1 + $0x88] sm:$0xff]
    %v41 = vld [vmem:[%s1 + $0x90] sm:$0xff]
    %v42 = vld [vmem:[%s1 + $0x98] sm:$0xff]
    %v43 = vld [vmem:[%s1 + $0xa0] sm:$0xff]
    %v44 = vld [vmem:[%s1 + $0xa8] sm:$0xff]
    %v45 = vld [vmem:[%s1 + $0xb0] sm:$0xff]
    %v46 = vld [vmem:[%s1 + $0xb8] sm:$0xff]
    %v47 = vld [vmem:[%s1 + $0xc0] sm:$0xff]
    %v48 = vld [vmem:[%s1 + $0xc8] sm:$0xff]
    %v49 = vld [vmem:[%s1 + $0xd0] sm:$0xff]
    %v50 = vld [vmem:[%s1 + $0xd8] sm:$0xff]
    %v51 = vld [vmem:[%s1 + $0xe0] sm:$0xff]
    %v52 = vld [vmem:[%s1 + $0xe8] sm:$0xff]
    %v53 = vld [vmem:[%s1 + $0xf0] sm:$0xff]
    %v54 = vld [vmem:[%s1 + $0xf8] sm:$0xff]
    %v55 = vld [vmem:[%s2] sm:$0x1]
    %v57 = vlaneseq
    %v58 = vshrl.u32 %v57, 7
    %v59 = vsub.s32 0, %v58
    %v60 = vrot.slane %v55, %v59
    %62 = vmatprep.subr.mxu0 0.0
    %63 = vmatpush1.msra.mxu0 %v23
    %64 = vmatprep.subr.mxu0 0.0
    %65 = vmatpush1.msra.mxu0 %v24
    %66 = vmatprep.subr.mxu0 0.0
    %67 = vmatpush1.msra.mxu0 %v25
    %68 = vmatprep.subr.mxu0 0.0
    %69 = vmatpush1.msra.mxu0 %v26
    %70 = vmatprep.subr.mxu0 0.0
    %71 = vmatpush1.msra.mxu0 %v27
    %72 = vmatprep.subr.mxu0 0.0
    %73 = vmatpush1.msra.mxu0 %v28
    %74 = vmatprep.subr.mxu0 0.0
    %75 = vmatpush1.msra.mxu0 %v29
    %76 = vmatprep.subr.mxu0 0.0
    %77 = vmatpush1.msra.mxu0 %v30
    %78 = vmatprep.subr.mxu0 0.0
    %79 = vmatpush1.msra.mxu0 %v31
    %80 = vmatprep.subr.mxu0 0.0
    %81 = vmatpush1.msra.mxu0 %v32
    %82 = vmatprep.subr.mxu0 0.0
    %83 = vmatpush1.msra.mxu0 %v33
    %84 = vmatprep.subr.mxu0 0.0
    %85 = vmatpush1.msra.mxu0 %v34
    %86 = vmatprep.subr.mxu0 0.0
    %87 = vmatpush1.msra.mxu0 %v35
    %88 = vmatprep.subr.mxu0 0.0
    %89 = vmatpush1.msra.mxu0 %v36
    %90 = vmatprep.subr.mxu0 0.0
    %91 = vmatpush1.msra.mxu0 %v37
    %92 = vmatprep.subr.mxu0 0.0
    %93 = vmatpush1.msra.mxu0 %v38
    %94 = vmatprep.subr.mxu0 0.0
    %95 = vmatpush1.msra.mxu0 %v39
    %96 = vmatprep.subr.mxu0 0.0
    %97 = vmatpush1.msra.mxu0 %v40
    %98 = vmatprep.subr.mxu0 0.0
    %99 = vmatpush1.msra.mxu0 %v41
    %100 = vmatprep.subr.mxu0 0.0
    %101 = vmatpush1.msra.mxu0 %v42
    %102 = vmatprep.subr.mxu0 0.0
    %103 = vmatpush1.msra.mxu0 %v43
    %104 = vmatprep.subr.mxu0 0.0
    %105 = vmatpush1.msra.mxu0 %v44
    %106 = vmatprep.subr.mxu0 0.0
    %107 = vmatpush1.msra.mxu0 %v45
    %108 = vmatprep.subr.mxu0 0.0
    %109 = vmatpush1.msra.mxu0 %v46
    %110 = vmatprep.subr.mxu0 0.0
    %111 = vmatpush1.msra.mxu0 %v47
    %112 = vmatprep.subr.mxu0 0.0
    %113 = vmatpush1.msra.mxu0 %v48
    %114 = vmatprep.subr.mxu0 0.0
    %115 = vmatpush1.msra.mxu0 %v49
    %116 = vmatprep.subr.mxu0 0.0
    %117 = vmatpush1.msra.mxu0 %v50
    %118 = vmatprep.subr.mxu0 0.0
    %119 = vmatpush1.msra.mxu0 %v51
    %120 = vmatprep.subr.mxu0 0.0
    %121 = vmatpush1.msra.mxu0 %v52
    %122 = vmatprep.subr.mxu0 0.0
    %123 = vmatpush1.msra.mxu0 %v53
    %124 = vmatprep.subr.mxu0 0.0
    %125 = vmatpush1.msra.mxu0 %v54
    %126 = vmatprep.mubr.f32.mxu0 %v22
    %127 = vmatmul.mubr.f32.gmra.mrb[0].mxu0 %v21
    %v128 = vpop.f32.mrb[0].mxu0
    %v129 = vadd.f32 %v60, %v128
    %v130 = vpop.f32.mrb[0].mxu0
    %131 = vdwg.mxu0
    %v132 = vmax.f32 %v129, 0.0
    %v133 = vld [vmem:[%s3] sm:$0xff]
    %v134 = vld [vmem:[%s3 + $0x8] sm:$0xff]
    %v135 = vld [vmem:[%s3 + $0x10] sm:$0xff]
    %v136 = vld [vmem:[%s3 + $0x18] sm:$0xff]
    %v137 = vld [vmem:[%s3 + $0x20] sm:$0xff]
    %v138 = vld [vmem:[%s3 + $0x28] sm:$0xff]
    %v139 = vld [vmem:[%s3 + $0x30] sm:$0xff]
    %v140 = vld [vmem:[%s3 + $0x38] sm:$0xff]
    %v141 = vld [vmem:[%s4] sm:$0x1]
    %v143 = vlaneseq
    %v144 = vshrl.u32 %v143, 7
    %v145 = vsub.s32 0, %v144
    %v146 = vrot.slane %v141, %v145
    %vm148 = vcmask 523264
    %v150 = vsel %vm148, %v132, 0
    %152 = vmatprep.subr.mxu0 0.0
    %153 = vmatpush1.msra.mxu0 %v133
    %154 = vmatprep.subr.mxu0 0.0
    %155 = vmatpush1.msra.mxu0 %v134
    %156 = vmatprep.subr.mxu0 0.0
    %157 = vmatpush1.msra.mxu0 %v135
    %158 = vmatprep.subr.mxu0 0.0
    %159 = vmatpush1.msra.mxu0 %v136
    %160 = vmatprep.subr.mxu0 0.0
    %161 = vmatpush1.msra.mxu0 %v137
    %162 = vmatprep.subr.mxu0 0.0
    %163 = vmatpush1.msra.mxu0 %v138
    %164 = vmatprep.subr.mxu0 0.0
    %165 = vmatpush1.msra.mxu0 %v139
    %166 = vmatprep.subr.mxu0 0.0
    %167 = vmatpush1.msra.mxu0 %v140
    %168 = vmatprep.subr.mxu0 0.0
    %169 = vmatpush1.msra.mxu0 0.0
    %170 = vmatprep.subr.mxu0 0.0
    %171 = vmatpush1.msra.mxu0 0.0
    %172 = vmatprep.subr.mxu0 0.0
    %173 = vmatpush1.msra.mxu0 0.0
    %174 = vmatprep.subr.mxu0 0.0
    %175 = vmatpush1.msra.mxu0 0.0
    %176 = vmatprep.subr.mxu0 0.0
    %177 = vmatpush1.msra.mxu0 0.0
    %178 = vmatprep.subr.mxu0 0.0
    %179 = vmatpush1.msra.mxu0 0.0
    %180 = vmatprep.subr.mxu0 0.0
    %181 = vmatpush1.msra.mxu0 0.0
    %182 = vmatprep.subr.mxu0 0.0
    %183 = vmatpush1.msra.mxu0 0.0
    %184 = vmatprep.subr.mxu0 0.0
    %185 = vmatpush1.msra.mxu0 0.0
    %186 = vmatprep.subr.mxu0 0.0
    %187 = vmatpush1.msra.mxu0 0.0
    %188 = vmatprep.subr.mxu0 0.0
    %189 = vmatpush1.msra.mxu0 0.0
    %190 = vmatprep.subr.mxu0 0.0
    %191 = vmatpush1.msra.mxu0 0.0
    %192 = vmatprep.subr.mxu0 0.0
    %193 = vmatpush1.msra.mxu0 0.0
    %194 = vmatprep.subr.mxu0 0.0
    %195 = vmatpush1.msra.mxu0 0.0
    %196 = vmatprep.subr.mxu0 0.0
    %197 = vmatpush1.msra.mxu0 0.0
    %198 = vmatprep.subr.mxu0 0.0
    %199 = vmatpush1.msra.mxu0 0.0
    %200 = vmatprep.subr.mxu0 0.0
    %201 = vmatpush1.msra.mxu0 0.0
    %202 = vmatprep.subr.mxu0 0.0
    %203 = vmatpush1.msra.mxu0 0.0
    %204 = vmatprep.subr.mxu0 0.0
    %205 = vmatpush1.msra.mxu0 0.0
    %206 = vmatprep.subr.mxu0 0.0
    %207 = vmatpush1.msra.mxu0 0.0
    %208 = vmatprep.subr.mxu0 0.0
    %209 = vmatpush1.msra.mxu0 0.0
    %210 = vmatprep.subr.mxu0 0.0
    %211 = vmatpush1.msra.mxu0 0.0
    %212 = vmatprep.subr.mxu0 0.0
    %213 = vmatpush1.msra.mxu0 0.0
    %214 = vmatprep.subr.mxu0 0.0
    %215 = vmatpush1.msra.mxu0 0.0
    %216 = vmatprep.mubr.f32.mxu0 0.0
    %217 = vmatmul.mubr.f32.gmra.mrb[0].mxu0 %v150
    %v218 = vpop.f32.mrb[0].mxu0
    %v219 = vadd.f32 %v146, %v218
    %v220 = vpop.f32.mrb[0].mxu0
    %221 = vdwg.mxu0
    %v222 = vmax.f32 %v219, 0.0
    %vm223 = vcmask 130048
    %224 = vst.msk [vmem:[#allocation2] sm:$0xff] %vm223, %v222
    // Predicated region
    $region22: #{classifier_forward.1} parent=1 // pred_check
      _
    $region23: #{classifier_forward.1} parent=1 // pred_check_branch
      %226 = sbr.rel (0) target = $region25
    $region24: #{classifier_forward.1} parent=1 // pred_region
      %s228 = ssub.s32 128, 128
      %229 = vsyncadd [#allocation3], %s228
      %s231 = sshll.u32 [#allocation2], 4
      %s232 = int_to_ptr.vmem [resolvable:$true] %s231
      %234 = dma.vmem_to_hbm [thread:$0]  %s232, 128, %s5, [#allocation3]
    $region25: #{classifier_forward.1} parent=1 // pred_fallthru
      _
    // Predicated region
    $region26: #{classifier_forward.1} parent=1 // pred_check
      _
    $region27: #{classifier_forward.1} parent=1 // pred_check_branch
      %236 = sbr.rel (0) target = $region29
    $region28: #{classifier_forward.1} parent=1 // pred_region
      %237 = dma.done [#allocation3], 128
    $region29: #{classifier_forward.1} parent=1 // pred_fallthru
      _
    %238 = vsyncpa [#allocation3], 1

</llo_original>
